<compile_context>
chip_gen: v7x
topology: tpu7x:2x2x1
jax: 0.10.0
libtpu: 0.0.40
codegen_flags: <defaults>
</compile_context>

<pallas_src>
import functools

import jax
import jax.numpy as jnp
from jax import lax
from jax.experimental import pallas as pl
from jax.experimental.pallas import tpu as pltpu

LANE = 128
SUBLANE = 8


def _round_up(x, m):
    return (x + m - 1) // m * m


def _choose_tiles(n):
    """Pick (n_pad, q_tile, kv_tile): prefer big tiles, bounded padding waste."""
    if n <= 512:
        n_pad = _round_up(n, LANE)
        return n_pad, n_pad, n_pad
    for t in (512, 256, 128):
        n_pad = _round_up(n, t)
        if (n_pad - n) * 4 <= n_pad or t == LANE:   # <= ~25% padding waste
            return n_pad, t, t
    n_pad = _round_up(n, LANE)                       # unreachable
    return n_pad, LANE, LANE


def _vmem_bytes(*specs):
    """Rough VMEM footprint: (shape, dtype, n_buffers), lane/sublane padded."""
    total = 0
    for shape, dt, nbuf in specs:
        s = list(shape)
        s[-1] = _round_up(s[-1], LANE)
        if len(s) >= 2:
            s[-2] = _round_up(s[-2], SUBLANE)
        n = 1
        for d in s:
            n *= d
        total += n * jnp.dtype(dt).itemsize * nbuf
    return total


# --------------------------------------------------------------------------
# Kernel 1: fused Q/K/V 1x1x1-conv projection (channels-major, tiled over N)
# --------------------------------------------------------------------------
def _qkv_proj_kernel(x_ref, w_ref, b_ref, qt_ref, kt_ref, vt_ref):
    """One grid step = one (batch, N-tile).

    x_ref : (1, C, TN)  channels-major input tile
    w_ref : (3C, C)     [wq; wk; gamma*wv]  (C_out, C_in), MXU dtype
    b_ref : (3C, 1)     [bq; bk; gamma*bv]  f32
    *_ref : (1, C, TN)  Q^T / K^T / (gamma*V)^T tiles, MXU dtype
    """
    C = qt_ref.shape[1]
    x_t = x_ref[0].astype(w_ref.dtype)                                   # (C, TN)
    y = jnp.dot(w_ref[...], x_t, preferred_element_type=jnp.float32)     # (3C, TN)
    y = y + b_ref[...]
    qt_ref[0] = y[:C].astype(qt_ref.dtype)                               # sublane slices
    kt_ref[0] = y[C:2 * C].astype(kt_ref.dtype)
    vt_ref[0] = y[2 * C:].astype(vt_ref.dtype)


# --------------------------------------------------------------------------
# Kernel 2: flash attention over N, all heads, fused (gamma*out + x) epilogue
# --------------------------------------------------------------------------
def _flash_mha_kernel(qt_ref, kt_ref, vt_ref, xres_ref, out_ref,
                      q_scr, acc_scr, m_scr, l_scr,
                      *, num_heads, head_dim, n_valid, kv_tile, need_mask):
    """grid = (B, q_tiles, kv_tiles); the kv axis is the (arbitrary) reduction.

    qt_ref   : (1, C, TQ)   Q^T tile (channels-major, MXU dtype)
    kt_ref   : (1, C, TK)   K^T tile
    vt_ref   : (1, C, TK)   (gamma*V)^T tile
    xres_ref : (1, TQ, C)   residual view of x (raw reinterpret, matches torch .view)
    out_ref  : (1, TQ, C)   lane-dense output block
    q_scr    : (heads, TQ, hd)  Q transposed once per q-tile (MXU dtype)
    acc_scr  : (heads, TQ, hd)  running output accumulator (f32)
    m_scr    : (heads, TQ, 1)   running max (f32)
    l_scr    : (heads, TQ, 1)   running sum (f32)
    """
    ki = pl.program_id(2)
    nk = pl.num_programs(2)
    mma_dtype = qt_ref.dtype

    # ---- init: new (batch, q-tile): reset stats, transpose Q once (amortized over kv)
    @pl.when(ki == 0)
    def _init():
        m_scr[...] = jnp.full(m_scr.shape, -jnp.inf, m_scr.dtype)
        l_scr[...] = jnp.zeros(l_scr.shape, l_scr.dtype)
        acc_scr[...] = jnp.zeros(acc_scr.shape, acc_scr.dtype)
        for h in range(num_heads):
            q_scr[h] = qt_ref[0, h * head_dim:(h + 1) * head_dim, :].T   # (TQ, hd)

    # ---- additive bias masking zero-padded key columns (only last kv tile has any)
    if need_mask:
        col = ki * kv_tile + lax.broadcasted_iota(jnp.int32, (1, kv_tile), 1)
        kbias = jnp.where(col < n_valid, 0.0, -1e30).astype(jnp.float32)
    else:
        kbias = None

    # ---- online softmax over this kv tile, per head (fully unrolled) --------
    def head_body(h, carry):
        start = pl.multiple_of(h * head_dim, SUBLANE)
        k_h = kt_ref[0, pl.ds(start, head_dim), :]          # (hd, TK) sublane slice
        v_h = vt_ref[0, pl.ds(start, head_dim), :]          # (hd, TK)
        q_h = q_scr[h]                                      # (TQ, hd)

        s = jnp.dot(q_h, k_h, preferred_element_type=jnp.float32)       # (TQ, TK) f32
        if kbias is not None:
            s = s + kbias

        m_prev = m_scr[h]                                   # (TQ, 1)
        m_new = jnp.maximum(m_prev, jnp.max(s, axis=-1, keepdims=True))
        alpha = jnp.exp(m_prev - m_new)
        # exp in the MXU dtype: result feeds the PV matmul directly, and on
        # v6e/v7x the EUP has a bf16 path; accumulation stays f32.
        p = jnp.exp((s - m_new).astype(mma_dtype))          # (TQ, TK)

        l_scr[h] = alpha * l_scr[h] + jnp.sum(
            p.astype(jnp.float32), axis=-1, keepdims=True)
        pv = lax.dot_general(p, v_h, (((1,), (1,)), ((), ())),
                             preferred_element_type=jnp.float32)        # (TQ, hd)
        acc_scr[h] = alpha * acc_scr[h] + pv
        m_scr[h] = m_new
        return carry

    lax.fori_loop(0, num_heads, head_body, 0, unroll=num_heads <= 8)

    # ---- finalize: normalize, fuse residual, ONE lane-dense (TQ, C) store ---
    @pl.when(ki == nk - 1)
    def _finalize():
        parts = []
        for h in range(num_heads):
            inv = pl.reciprocal(l_scr[h], approx=False)     # (TQ, 1), once per q-tile
            parts.append(acc_scr[h] * inv)                  # (TQ, hd) f32; gamma is in V
        o_full = parts[0] if num_heads == 1 else jnp.concatenate(parts, axis=-1)
        res = xres_ref[0].astype(jnp.float32)               # (TQ, C)
        out_ref[0] = (o_full + res).astype(out_ref.dtype)


# --------------------------------------------------------------------------
# Wrapper
# --------------------------------------------------------------------------
def multi_head_attention_3d(x, wq, wk, wv, bq, bk, bv, gamma, num_heads,
                            *, mma_dtype=jnp.bfloat16):
    """Forward pass matching the PyTorch MultiHeadAttention3D module.

    x       : (B, C, D, H, W)
    wq/k/v  : (C, C)  torch Conv3d 1x1x1 weight, i.e. weight[:, :, 0, 0, 0]  (C_out, C_in)
    bq/k/v  : (C,)
    gamma   : scalar
    mma_dtype : dtype fed to the MXU matmuls (bf16 fast path, f32 exact path);
                accumulation is always f32.
    """
    B, C, D, H, W = x.shape
    N = D * H * W
    assert C % num_heads == 0
    head_dim = C // num_heads
    # TODO(synk): support head_dim that is not a multiple of 8 (needs padded heads).
    assert head_dim % SUBLANE == 0, "head_dim must be a multiple of 8"
    dtype = x.dtype
    mma_dtype = jnp.dtype(mma_dtype)

    n_pad, q_tile, kv_tile = _choose_tiles(N)
    proj_tile = q_tile
    while proj_tile * 2 <= 1024 and n_pad % (proj_tile * 2) == 0:
        proj_tile *= 2

    # Shrink attention tiles if the VMEM estimate would blow past ~40 MiB
    # (v7x has only 64 MiB of physical VMEM per TensorCore).
    def _k2_need(tq, tk):
        return _vmem_bytes(
            ((C, tq), mma_dtype, 2),
            ((C, tk), mma_dtype, 4),              # K and V blocks
            ((tq, C), dtype, 2),                  # residual
            ((tq, C), dtype, 2),                  # output
            ((num_heads, tq, head_dim), mma_dtype, 1),
            ((num_heads, tq, head_dim), jnp.float32, 1),
            ((num_heads, tq, 1), jnp.float32, 2),
        )

    while (2 * _k2_need(q_tile, kv_tile) > (40 << 20)
           and q_tile >= 256 and (q_tile // 2) % LANE == 0
           and n_pad % (q_tile // 2) == 0):
        q_tile //= 2
        if kv_tile >= 256 and n_pad % (kv_tile // 2) == 0:
            kv_tile //= 2

    # channels-major view for the projections (reshape only; pad N if needed)
    x_cn = x.reshape(B, C, N)
    if n_pad != N:
        x_cn = jnp.pad(x_cn, ((0, 0), (0, 0), (0, n_pad - N)))
    # raw-reinterpret view used by the fused residual: reproduces torch's final
    # .permute(0,2,1,3).contiguous().view(B, C, D, H, W) quirk exactly.
    x_res = x.reshape(B, N, C)
    if n_pad != N:
        x_res = jnp.pad(x_res, ((0, 0), (0, n_pad - N), (0, 0)))

    # gamma * (attn @ V) == attn @ (gamma * V): fold gamma into the V projection.
    gamma_f = jnp.asarray(gamma, jnp.float32).reshape(())
    w_all = jnp.concatenate(
        [wq.astype(jnp.float32), wk.astype(jnp.float32),
         wv.astype(jnp.float32) * gamma_f], axis=0).astype(mma_dtype)      # (3C, C)
    b_all = jnp.concatenate(
        [bq.astype(jnp.float32), bk.astype(jnp.float32),
         bv.astype(jnp.float32) * gamma_f], axis=0).reshape(3 * C, 1)      # (3C, 1) f32

    # ---------------- kernel 1: fused Q/K/V projection ----------------
    k1_need = _vmem_bytes(
        ((C, proj_tile), dtype, 2),
        ((3 * C, C), mma_dtype, 2),
        ((3 * C, 1), jnp.float32, 2),
        ((C, proj_tile), mma_dtype, 6),   # 3 outputs x 2 buffers
    )
    vmem1 = int(min(44 << 20, max(16 << 20, 2 * k1_need)))

    cn_spec = pl.BlockSpec((1, C, proj_tile), lambda b, i: (b, 0, i))
    # TODO(synk): single-buffer the constant weight/bias blocks
    # (pipeline_mode=pl.Buffered(1)) once verified on the target jax version.
    qt, kt, vt = pl.pallas_call(
        _qkv_proj_kernel,
        out_shape=[jax.ShapeDtypeStruct((B, C, n_pad), mma_dtype)] * 3,
        grid_spec=pltpu.PrefetchScalarGridSpec(
            num_scalar_prefetch=0,
            grid=(B, n_pad // proj_tile),
            in_specs=[cn_spec,
                      pl.BlockSpec((3 * C, C), lambda b, i: (0, 0)),
                      pl.BlockSpec((3 * C, 1), lambda b, i: (0, 0))],
            out_specs=[cn_spec] * 3,
        ),
        compiler_params=pltpu.CompilerParams(
            dimension_semantics=("parallel", "parallel"),
            vmem_limit_bytes=vmem1),
    )(x_cn, w_all, b_all)

    # ---------------- kernel 2: flash attention + fused residual ----------------
    nq, nk = n_pad // q_tile, n_pad // kv_tile
    vmem2 = int(min(44 << 20, max(16 << 20, 2 * _k2_need(q_tile, kv_tile))))

    isz = jnp.dtype(dtype).itemsize
    qisz = mma_dtype.itemsize
    cost = pl.CostEstimate(
        flops=int(4 * B * num_heads * n_pad * n_pad * head_dim),
        transcendentals=int(B * num_heads * n_pad * n_pad),
        bytes_accessed=int(qisz * B * C * n_pad * (1 + 2 * nq)
                           + isz * 2 * B * n_pad * C),
    )

    # NOTE: B * nq is the megacore-parallel extent on v7x (2 TCs/chip).
    out_pad = pl.pallas_call(
        functools.partial(_flash_mha_kernel,
                          num_heads=num_heads, head_dim=head_dim,
                          n_valid=N, kv_tile=kv_tile, need_mask=(n_pad != N)),
        out_shape=jax.ShapeDtypeStruct((B, n_pad, C), dtype),
        grid_spec=pltpu.PrefetchScalarGridSpec(
            num_scalar_prefetch=0,
            grid=(B, nq, nk),
            in_specs=[
                pl.BlockSpec((1, C, q_tile), lambda b, qi, ki: (b, 0, qi)),   # Q^T
                pl.BlockSpec((1, C, kv_tile), lambda b, qi, ki: (b, 0, ki)),  # K^T
                pl.BlockSpec((1, C, kv_tile), lambda b, qi, ki: (b, 0, ki)),  # (gamma V)^T
                pl.BlockSpec((1, q_tile, C), lambda b, qi, ki: (b, qi, 0)),   # residual x
            ],
            out_specs=pl.BlockSpec((1, q_tile, C), lambda b, qi, ki: (b, qi, 0)),
            scratch_shapes=[
                pltpu.VMEM((num_heads, q_tile, head_dim), mma_dtype),    # Q (transposed)
                pltpu.VMEM((num_heads, q_tile, head_dim), jnp.float32),  # acc
                pltpu.VMEM((num_heads, q_tile, 1), jnp.float32),         # running max
                pltpu.VMEM((num_heads, q_tile, 1), jnp.float32),         # running sum
            ],
        ),
        compiler_params=pltpu.CompilerParams(
            dimension_semantics=("parallel", "parallel", "arbitrary"),
            vmem_limit_bytes=vmem2),
        cost_estimate=cost,
    )(qt, kt, vt, x_res)

    out = out_pad[:, :N, :] if n_pad != N else out_pad
    # torch: out.view(B, heads, N, hd).permute(0,2,1,3).contiguous().view(B,C,D,H,W)
    # is a raw reinterpret of the (B, N, C) buffer -> reshape reproduces it exactly.
    return out.reshape(B, C, D, H, W)


# --------------------------------------------------------------------------
# Pure-JAX reference mirroring the PyTorch forward exactly
# --------------------------------------------------------------------------
def reference(x, wq, wk, wv, bq, bk, bv, gamma, num_heads):
    B, C, D, H, W = x.shape
    N = D * H * W
    hd = C // num_heads
    xl = jnp.transpose(x.reshape(B, C, N), (0, 2, 1))  # (B, N, C)

    def proj(w, b):
        return xl @ w.T + b  # torch conv weight layout (C_out, C_in)

    def split(t):  # (B, N, C) -> (B, heads, N, hd); head h = channels [h*hd, (h+1)*hd)
        return jnp.transpose(t.reshape(B, N, num_heads, hd), (0, 2, 1, 3))

    q, k, v = split(proj(wq, bq)), split(proj(wk, bk)), split(proj(wv, bv))
    energy = jnp.einsum('bhnd,bhmd->bhnm', q, k)
    attn = jax.nn.softmax(energy, axis=-1)
    o = jnp.einsum('bhnm,bhmd->bhnd', attn, v)
    o = jnp.transpose(o, (0, 2, 1, 3)).reshape(B, C, D, H, W)
    return gamma * o + x


def _run_case(key, B, C, D, H, W, num_heads, mma_dtype, rtol, atol, label):
    ks = jax.random.split(key, 7)
    x = jax.random.normal(ks[0], (B, C, D, H, W), jnp.float32)
    scale = 1.0 / jnp.sqrt(jnp.float32(C))
    wq = jax.random.normal(ks[1], (C, C), jnp.float32) * scale
    wk = jax.random.normal(ks[2], (C, C), jnp.float32) * scale
    wv = jax.random.normal(ks[3], (C, C), jnp.float32) * scale
    bq = jax.random.normal(ks[4], (C,), jnp.float32) * 0.1
    bk = jax.random.normal(ks[5], (C,), jnp.float32) * 0.1
    bv = jax.random.normal(ks[6], (C,), jnp.float32) * 0.1
    # nn.Parameter(torch.zeros(1)) initializes gamma to 0 (output == x); use a
    # nonzero deterministic value so the attention path is actually exercised.
    gamma = jnp.float32(0.5)

    y = multi_head_attention_3d(x, wq, wk, wv, bq, bk, bv, gamma, num_heads,
                                mma_dtype=mma_dtype)
    jax.block_until_ready(y)
    y_ref = reference(x, wq, wk, wv, bq, bk, bv, gamma, num_heads)
    assert y.shape == x.shape
    err = float(jnp.max(jnp.abs(y - y_ref)))
    assert jnp.allclose(y, y_ref, rtol=rtol, atol=atol), f"{label}: max abs err = {err}"


if __name__ == "__main__":
    key = jax.random.PRNGKey(0)
    k1, k2 = jax.random.split(key)
    # small single-tile case: exact f32 MXU path (tight tol) and fast bf16 path
    _run_case(k1, 2, 16, 4, 4, 4, 2, jnp.float32, 2e-4, 2e-4, "f32 small")
    _run_case(k1, 2, 16, 4, 4, 4, 2, jnp.bfloat16, 1.5e-1, 1.5e-1, "bf16 small")
    # multi-tile case: N=640 -> n_pad=768, 3x3 q/kv grid, padded-key masking
    _run_case(k2, 1, 32, 8, 8, 10, 4, jnp.float32, 2e-4, 2e-4, "f32 multi-tile")
    print("KERNEL_OK")
</pallas_src>

<mosaic_0001>
module attributes {stable_mosaic.version = 11 : i64} {
  func.func @_qkv_proj_kernel(%arg0: i32, %arg1: i32, %arg2: memref<1x16x128xf32, #tpu.memory_space<vmem>>, %arg3: memref<48x16xf32, #tpu.memory_space<vmem>>, %arg4: memref<48x1xf32, #tpu.memory_space<vmem>>, %arg5: memref<1x16x128xf32, #tpu.memory_space<vmem>>, %arg6: memref<1x16x128xf32, #tpu.memory_space<vmem>>, %arg7: memref<1x16x128xf32, #tpu.memory_space<vmem>>) attributes {dimension_semantics = [#tpu.dimension_semantics<parallel>, #tpu.dimension_semantics<parallel>], iteration_bounds = array<i64: 2, 1>, scalar_prefetch = 0 : i64, scratch_operands = 0 : i64, tpu.core_type = #tpu.core_type<tc>, window_params = [{transform_indices = @transform_0, window_bounds = array<i64: 1, 16, 128>}, {pipeline_mode = #tpu.pipeline_mode<synchronous>, transform_indices = @transform_1, window_bounds = array<i64: 48, 16>}, {pipeline_mode = #tpu.pipeline_mode<synchronous>, transform_indices = @transform_2, window_bounds = array<i64: 48, 1>}, {transform_indices = @transform_3, window_bounds = array<i64: 1, 16, 128>}, {transform_indices = @transform_4, window_bounds = array<i64: 1, 16, 128>}, {transform_indices = @transform_5, window_bounds = array<i64: 1, 16, 128>}]} {
    %c0 = arith.constant 0 : index
    %c0_0 = arith.constant 0 : index
    %c0_1 = arith.constant 0 : index
    %0 = vector.load %arg2[%c0, %c0_0, %c0_1] : memref<1x16x128xf32, #tpu.memory_space<vmem>>, vector<1x16x128xf32>
    %1 = vector.shape_cast %0 : vector<1x16x128xf32> to vector<16x128xf32>
    %c0_2 = arith.constant 0 : index
    %c0_3 = arith.constant 0 : index
    %2 = vector.load %arg3[%c0_2, %c0_3] : memref<48x16xf32, #tpu.memory_space<vmem>>, vector<48x16xf32>
    %cst = arith.constant dense<0.000000e+00> : vector<48x128xf32>
    %3 = tpu.matmul %2, %1, %cst {dimension_numbers = #tpu.dot_dimension_numbers<[1], [0], [0], [1], [0, 0, 1, 1], [], []>} : vector<48x16xf32>, vector<16x128xf32>, vector<48x128xf32> -> vector<48x128xf32>
    %c0_4 = arith.constant 0 : index
    %c0_5 = arith.constant 0 : index
    %4 = vector.load %arg4[%c0_4, %c0_5] : memref<48x1xf32, #tpu.memory_space<vmem>>, vector<48x1xf32>
    %5 = vector.broadcast %4 : vector<48x1xf32> to vector<48x128xf32>
    %6 = arith.addf %3, %5 : vector<48x128xf32>
    %7 = vector.extract_strided_slice %6 {offsets = [0, 0], sizes = [16, 128], strides = [1, 1]} : vector<48x128xf32> to vector<16x128xf32>
    %c0_6 = arith.constant 0 : index
    %c0_7 = arith.constant 0 : index
    %c0_8 = arith.constant 0 : index
    %8 = vector.load %arg5[%c0_6, %c0_7, %c0_8] : memref<1x16x128xf32, #tpu.memory_space<vmem>>, vector<1x16x128xf32>
    %9 = vector.shape_cast %8 : vector<1x16x128xf32> to vector<16x128xf32>
    %10 = vector.shape_cast %7 : vector<16x128xf32> to vector<1x16x128xf32>
    tpu.vector_store %arg5[%c0_6, %c0_7, %c0_8], %10 {strides = array<i32>} : memref<1x16x128xf32, #tpu.memory_space<vmem>>, vector<1x16x128xf32>,
    %11 = vector.extract_strided_slice %6 {offsets = [16, 0], sizes = [16, 128], strides = [1, 1]} : vector<48x128xf32> to vector<16x128xf32>
    %c0_9 = arith.constant 0 : index
    %c0_10 = arith.constant 0 : index
    %c0_11 = arith.constant 0 : index
    %12 = vector.load %arg6[%c0_9, %c0_10, %c0_11] : memref<1x16x128xf32, #tpu.memory_space<vmem>>, vector<1x16x128xf32>
    %13 = vector.shape_cast %12 : vector<1x16x128xf32> to vector<16x128xf32>
    %14 = vector.shape_cast %11 : vector<16x128xf32> to vector<1x16x128xf32>
    tpu.vector_store %arg6[%c0_9, %c0_10, %c0_11], %14 {strides = array<i32>} : memref<1x16x128xf32, #tpu.memory_space<vmem>>, vector<1x16x128xf32>,
    %15 = vector.extract_strided_slice %6 {offsets = [32, 0], sizes = [16, 128], strides = [1, 1]} : vector<48x128xf32> to vector<16x128xf32>
    %c0_12 = arith.constant 0 : index
    %c0_13 = arith.constant 0 : index
    %c0_14 = arith.constant 0 : index
    %16 = vector.load %arg7[%c0_12, %c0_13, %c0_14] : memref<1x16x128xf32, #tpu.memory_space<vmem>>, vector<1x16x128xf32>
    %17 = vector.shape_cast %16 : vector<1x16x128xf32> to vector<16x128xf32>
    %18 = vector.shape_cast %15 : vector<16x128xf32> to vector<1x16x128xf32>
    tpu.vector_store %arg7[%c0_12, %c0_13, %c0_14], %18 {strides = array<i32>} : memref<1x16x128xf32, #tpu.memory_space<vmem>>, vector<1x16x128xf32>,
    return
  }
  func.func @transform_0(%arg0: i32, %arg1: i32) -> (i32, i32, i32) {
    %c0_i32 = arith.constant 0 : i32
    %c0_i32_0 = arith.constant 0 : i32
    return %arg0, %c0_i32, %arg1 : i32, i32, i32
  }
  func.func @transform_1(%arg0: i32, %arg1: i32) -> (i32, i32) {
    %c0_i32 = arith.constant 0 : i32
    %c0_i32_0 = arith.constant 0 : i32
    %c0_i32_1 = arith.constant 0 : i32
    return %c0_i32, %c0_i32_0 : i32, i32
  }
  func.func @transform_2(%arg0: i32, %arg1: i32) -> (i32, i32) {
    %c0_i32 = arith.constant 0 : i32
    %c0_i32_0 = arith.constant 0 : i32
    %c0_i32_1 = arith.constant 0 : i32
    return %c0_i32, %c0_i32_0 : i32, i32
  }
  func.func @transform_3(%arg0: i32, %arg1: i32) -> (i32, i32, i32) {
    %c0_i32 = arith.constant 0 : i32
    %c0_i32_0 = arith.constant 0 : i32
    return %arg0, %c0_i32, %arg1 : i32, i32, i32
  }
  func.func @transform_4(%arg0: i32, %arg1: i32) -> (i32, i32, i32) {
    %c0_i32 = arith.constant 0 : i32
    %c0_i32_0 = arith.constant 0 : i32
    return %arg0, %c0_i32, %arg1 : i32, i32, i32
  }
  func.func @transform_5(%arg0: i32, %arg1: i32) -> (i32, i32, i32) {
    %c0_i32 = arith.constant 0 : i32
    %c0_i32_0 = arith.constant 0 : i32
    return %arg0, %c0_i32, %arg1 : i32, i32, i32
  }
}

</mosaic_0001>

<llo_original>
// kernel: tpu_custom_call.1
$region0: #{tpu_custom_call.1}
  #allocation0 [shape = 'u32[]', space=smem, size = 0x4, offset = 0x4, fixed_abs, tag = 'smem constant byte address 0x4 - core index']
  #allocation1 [shape = 'u32[144,128]{1,0:T(1,128)}', space=vmem, size = 0x12000, scoped, tag = 'internal scratch']
  %s0 = inlined_call_operand.vmem [shape: f32[2,16,128], index: 0, kind: input, shape index: {}]
  %s1 = inlined_call_operand.vmem [shape: f32[48,16], index: 1, kind: input, shape index: {}]
  %s2 = inlined_call_operand.vmem [shape: f32[48,1], index: 2, kind: input, shape index: {}]
  %s3 = inlined_call_operand.hbm [shape: f32[2,16,128], index: 3, kind: output, shape index: {0}]
  %s4 = inlined_call_operand.hbm [shape: f32[2,16,128], index: 4, kind: output, shape index: {1}]
  %s5 = inlined_call_operand.hbm [shape: f32[2,16,128], index: 5, kind: output, shape index: {2}]
  %6 = xla_tuple %s3, %s4, %s5
  %s7 = sld [smem:[#allocation0]]
  $region61: #{tpu_custom_call.1} parent=0
    _
  %s9 = ssub.s32 1, %s7
  %s10 = scalar_select 0, %s9, %s7
  $region1: #{tpu_custom_call.1} parent=0
    #allocation2 [shape = 'u8[16384]{0}', space=vmem, size = 0x4000, scoped, tag = 'output window, operand 0']
    #allocation3 [shape = 's32[2]{0}', space=sflag, size = 0x8, scoped, tag = 'scoped memory for tpu_custom_call.1']
    #allocation4 [shape = 'u8[16384]{0}', space=vmem, size = 0x4000, scoped, tag = 'output window, operand 1']
    #allocation5 [shape = 's32[2]{0}', space=sflag, size = 0x8, scoped, tag = 'scoped memory for tpu_custom_call.1']
    #allocation6 [shape = 'u8[16384]{0}', space=vmem, size = 0x4000, scoped, tag = 'output window, operand 2']
    %11 = vsyncpa [#allocation3], 0
    %s12 = scalar_lea.sflag [#allocation3], 1
    %13 = vsyncpa %s12, 0
    %14 = vsyncpa [#allocation5], 0
    %s15 = scalar_lea.sflag [#allocation5], 1
    %16 = vsyncpa %s15, 0
    loop: start=0, step=1, limit=4
    $region2: #{tpu_custom_call.1} parent=1 // loop_pre_header
      _
    $region3: #{tpu_custom_call.1} parent=1 // loop_header
      %s18 = sphi 0, %s22
      %p19 = scmp.ge.s32.totalorder %s18, 4
      %s25 = sphi 0, %s37
      %s26 = sphi 0, %s33
      %s27 = sphi 0, %s25
      %s28 = sphi 0, %s26
      %s29 = sphi 0, %s27
      %s30 = sphi 0, %s28
      %s42 = sphi 0, %s44
      %s45 = sphi 0, %s42
      %s46 = sphi 0, %s45
      %s62 = sphi 0, %s46
      %s66 = sphi 0, %s66
      %s68 = sphi 0, %s66
      %s69 = sphi 0, %s68
      %s83 = sphi 0, %s69
      %s87 = sphi 0, %s87
      %s89 = sphi 0, %s87
      %s90 = sphi 0, %s89
      %s104 = sphi 0, %s90
      %s112 = sphi 0, %s114
      %s115 = sphi 0, %s112
      %s116 = sphi 0, %s115
      %s132 = sphi 0, %s116
      %s140 = sphi 0, %s142
      %s143 = sphi 0, %s140
      %s144 = sphi 0, %s143
      %s160 = sphi 0, %s144
      %s168 = sphi 0, %s170
      %s171 = sphi 0, %s168
      %s172 = sphi 0, %s171
      %s188 = sphi 0, %s172
    $region4: #{tpu_custom_call.1} parent=1 // loop_header_branch
      %21 = sbr.rel (%p19) target = $region8
    $region5: #{tpu_custom_call.1} parent=1 // loop_body
      %s23 = ssub.s32 %s18, 1
      %s24 = ssub.s32 %s18, 2
      %s31 = sadd.s32 1, %s26
      %p32 = scmp.ge.s32.totalorder %s31, 1
      %s33 = scalar_select %p32, 0, %s31
      %s34 = sadd.s32 1, %s25
      %s35 = scalar_select %p32, %s34, %s25
      %p36 = scmp.ge.s32.totalorder %s35, 2
      %s37 = scalar_select %p36, 0, %s35
      %s38 = ssub.s32 %s25, %s37
      %s39 = ssub.s32 %s26, %s33
      %s40 = sor.u32 %s38, %s39
      %p41 = scmp.eq.s32.totalorder %s40, 0
      %s43 = sadd.s32 %s42, 1
      %s44 = scalar_select %p41, %s42, %s43
      %p47 = pneg %p41
      %p48 = scmp.eq.s32.totalorder %s18, 1
      %p49 = por %p47, %p48
      %p50 = scmp.ne.s32.totalorder %s42, %s45
      %p51 = scmp.eq.s32.totalorder %s18, 0
      %p52 = por %p50, %p51
      %p53 = scmp.ne.s32.totalorder %s42, %s45
      %p54 = scmp.eq.s32.totalorder %s23, 1
      %p55 = por %p53, %p54
      %p56 = scmp.ne.s32.totalorder %s45, %s46
      %p57 = scmp.eq.s32.totalorder %s23, 0
      %p58 = por %p56, %p57
      %p59 = scmp.ne.s32.totalorder %s45, %s46
      %p60 = scmp.eq.s32.totalorder %s24, 1
      %p61 = por %p59, %p60
      %p63 = scmp.ne.s32.totalorder %s46, %s62
      %p64 = scmp.eq.s32.totalorder %s24, 0
      %p65 = por %p63, %p64
      %s67 = sadd.s32 %s66, 1
      %p70 = scmp.eq.s32.totalorder %s18, 1
      %p71 = scmp.ne.s32.totalorder %s66, %s68
      %p72 = scmp.eq.s32.totalorder %s18, 0
      %p73 = por %p71, %p72
      %p74 = scmp.ne.s32.totalorder %s66, %s68
      %p75 = scmp.eq.s32.totalorder %s23, 1
      %p76 = por %p74, %p75
      %p77 = scmp.ne.s32.totalorder %s68, %s69
      %p78 = scmp.eq.s32.totalorder %s23, 0
      %p79 = por %p77, %p78
      %p80 = scmp.ne.s32.totalorder %s68, %s69
      %p81 = scmp.eq.s32.totalorder %s24, 1
      %p82 = por %p80, %p81
      %p84 = scmp.ne.s32.totalorder %s69, %s83
      %p85 = scmp.eq.s32.totalorder %s24, 0
      %p86 = por %p84, %p85
      %s88 = sadd.s32 %s87, 1
      %p91 = scmp.eq.s32.totalorder %s18, 1
      %p92 = scmp.ne.s32.totalorder %s87, %s89
      %p93 = scmp.eq.s32.totalorder %s18, 0
      %p94 = por %p92, %p93
      %p95 = scmp.ne.s32.totalorder %s87, %s89
      %p96 = scmp.eq.s32.totalorder %s23, 1
      %p97 = por %p95, %p96
      %p98 = scmp.ne.s32.totalorder %s89, %s90
      %p99 = scmp.eq.s32.totalorder %s23, 0
      %p100 = por %p98, %p99
      %p101 = scmp.ne.s32.totalorder %s89, %s90
      %p102 = scmp.eq.s32.totalorder %s24, 1
      %p103 = por %p101, %p102
      %p105 = scmp.ne.s32.totalorder %s90, %s104
      %p106 = scmp.eq.s32.totalorder %s24, 0
      %p107 = por %p105, %p106
      %s108 = ssub.s32 %s25, %s37
      %s109 = ssub.s32 %s26, %s33
      %s110 = sor.u32 %s108, %s109
      %p111 = scmp.eq.s32.totalorder %s110, 0
      %s113 = sadd.s32 %s112, 1
      %s114 = scalar_select %p111, %s112, %s113
      %p117 = pneg %p111
      %p118 = scmp.eq.s32.totalorder %s18, 1
      %p119 = por %p117, %p118
      %p120 = scmp.ne.s32.totalorder %s112, %s115
      %p121 = scmp.eq.s32.totalorder %s18, 0
      %p122 = por %p120, %p121
      %p123 = scmp.ne.s32.totalorder %s112, %s115
      %p124 = scmp.eq.s32.totalorder %s23, 1
      %p125 = por %p123, %p124
      %p126 = scmp.ne.s32.totalorder %s115, %s116
      %p127 = scmp.eq.s32.totalorder %s23, 0
      %p128 = por %p126, %p127
      %p129 = scmp.ne.s32.totalorder %s115, %s116
      %p130 = scmp.eq.s32.totalorder %s24, 1
      %p131 = por %p129, %p130
      %p133 = scmp.ne.s32.totalorder %s116, %s132
      %p134 = scmp.eq.s32.totalorder %s24, 0
      %p135 = por %p133, %p134
      %s136 = ssub.s32 %s25, %s37
      %s137 = ssub.s32 %s26, %s33
      %s138 = sor.u32 %s136, %s137
      %p139 = scmp.eq.s32.totalorder %s138, 0
      %s141 = sadd.s32 %s140, 1
      %s142 = scalar_select %p139, %s140, %s141
      %p145 = pneg %p139
      %p146 = scmp.eq.s32.totalorder %s18, 1
      %p147 = por %p145, %p146
      %p148 = scmp.ne.s32.totalorder %s140, %s143
      %p149 = scmp.eq.s32.totalorder %s18, 0
      %p150 = por %p148, %p149
      %p151 = scmp.ne.s32.totalorder %s140, %s143
      %p152 = scmp.eq.s32.totalorder %s23, 1
      %p153 = por %p151, %p152
      %p154 = scmp.ne.s32.totalorder %s143, %s144
      %p155 = scmp.eq.s32.totalorder %s23, 0
      %p156 = por %p154, %p155
      %p157 = scmp.ne.s32.totalorder %s143, %s144
      %p158 = scmp.eq.s32.totalorder %s24, 1
      %p159 = por %p157, %p158
      %p161 = scmp.ne.s32.totalorder %s144, %s160
      %p162 = scmp.eq.s32.totalorder %s24, 0
      %p163 = por %p161, %p162
      %s164 = ssub.s32 %s25, %s37
      %s165 = ssub.s32 %s26, %s33
      %s166 = sor.u32 %s164, %s165
      %p167 = scmp.eq.s32.totalorder %s166, 0
      %s169 = sadd.s32 %s168, 1
      %s170 = scalar_select %p167, %s168, %s169
      %p173 = pneg %p167
      %p174 = scmp.eq.s32.totalorder %s18, 1
      %p175 = por %p173, %p174
      %p176 = scmp.ne.s32.totalorder %s168, %s171
      %p177 = scmp.eq.s32.totalorder %s18, 0
      %p178 = por %p176, %p177
      %p179 = scmp.ne.s32.totalorder %s168, %s171
      %p180 = scmp.eq.s32.totalorder %s23, 1
      %p181 = por %p179, %p180
      %p182 = scmp.ne.s32.totalorder %s171, %s172
      %p183 = scmp.eq.s32.totalorder %s23, 0
      %p184 = por %p182, %p183
      %p185 = scmp.ne.s32.totalorder %s171, %s172
      %p186 = scmp.eq.s32.totalorder %s24, 1
      %p187 = por %p185, %p186
      %p189 = scmp.ne.s32.totalorder %s172, %s188
      %p190 = scmp.eq.s32.totalorder %s24, 0
      %p191 = por %p189, %p190
      %p192 = scmp.le.s32.totalorder 1, %s18
      %p193 = scmp.lt.s32.totalorder %s18, 3
      %p194 = pnand %p192, %p193
      %p195 = pneg %p194
      // Predicated region
      $region9: #{tpu_custom_call.1} parent=5 // pred_check
        _
      $region10: #{tpu_custom_call.1} parent=5 // pred_check_branch
        %197 = sbr.rel (%p194) target = $region12
      $region11: #{tpu_custom_call.1} parent=5 // pred_region
        %s198 = ssub.s32 %s18, 1
        // Predicated region
        $region13: #{tpu_custom_call.1} parent=11 // pred_check
          %p199 = pneg %p79
        $region14: #{tpu_custom_call.1} parent=11 // pred_check_branch
          %201 = sbr.rel (%p199) target = $region16
        $region15: #{tpu_custom_call.1} parent=11 // pred_region
          _
        $region16: #{tpu_custom_call.1} parent=11 // pred_fallthru
          _
        // Predicated region
        $region17: #{tpu_custom_call.1} parent=11 // pred_check
          %p202 = pneg %p100
        $region18: #{tpu_custom_call.1} parent=11 // pred_check_branch
          %204 = sbr.rel (%p202) target = $region20
        $region19: #{tpu_custom_call.1} parent=11 // pred_region
          _
        $region20: #{tpu_custom_call.1} parent=11 // pred_fallthru
          _
      $region12: #{tpu_custom_call.1} parent=5 // pred_fallthru
        _
      %p205 = scmp.lt.s32.totalorder %s18, 2
      // Predicated region
      $region21: #{tpu_custom_call.1} parent=5 // pred_check
        %p206 = pneg %p205
      $region22: #{tpu_custom_call.1} parent=5 // pred_check_branch
        %208 = sbr.rel (%p206) target = $region24
      $region23: #{tpu_custom_call.1} parent=5 // pred_region
        // Predicated region
        $region25: #{tpu_custom_call.1} parent=23 // pred_check
          %p209 = pneg %p52
        $region26: #{tpu_custom_call.1} parent=23 // pred_check_branch
          %211 = sbr.rel (%p209) target = $region28
        $region27: #{tpu_custom_call.1} parent=23 // pred_region
          %p212 = scmp.lt.s32.totalorder %s25, 1
          %s213 = scalar_select %p212, %s25, 1
          %p214 = scmp.lt.s32.totalorder %s26, 0
          %s215 = scalar_select %p214, %s26, 0
          %s216 = smul.addr %s213, 2
          %s217 = sadd.s32 %s215, %s216
          %s218 = smul.addr %s217, 8
          %s219 = scalar_lea.vmem %s0, %s218
        $region28: #{tpu_custom_call.1} parent=23 // pred_fallthru
          _
      $region24: #{tpu_custom_call.1} parent=5 // pred_fallthru
        _
      %p220 = scmp.le.s32.totalorder 1, %s18
      %p221 = scmp.lt.s32.totalorder %s18, 3
      %p222 = pnand %p220, %p221
      %p223 = pneg %p222
      // Predicated region
      $region29: #{tpu_custom_call.1} parent=5 // pred_check
        _
      $region30: #{tpu_custom_call.1} parent=5 // pred_check_branch
        %225 = sbr.rel (%p222) target = $region32
      $region31: #{tpu_custom_call.1} parent=5 // pred_region
        %s226 = ssub.s32 %s18, 1
        %p227 = scmp.lt.s32.totalorder %s27, 1
        %s228 = scalar_select %p227, %s27, 1
        %p229 = scmp.lt.s32.totalorder %s28, 0
        %s230 = scalar_select %p229, %s28, 0
        %s231 = smul.addr %s228, 2
        %s232 = sadd.s32 %s230, %s231
        %s233 = smul.addr %s232, 8
        %s234 = scalar_lea.vmem %s0, %s233
        %p235 = pneg %p58
        %p236 = pneg %p55
        %p237 = pneg %p79
        %p238 = pneg %p76
        %p239 = pneg %p100
        %p240 = pneg %p97
        %p241 = pneg %p128
        %p242 = pneg %p125
        %s243 = sand.u32 %s115, 1
        %s244 = scalar_lea.sflag [#allocation3], %s243
        %s245 = sand.u32 %s115, 1
        %s246 = smul.addr %s245, 16
        %s247 = scalar_lea.vmem [#allocation2], %s246
        %p248 = pneg %p156
        %p249 = pneg %p153
        %s250 = sand.u32 %s23, 1
        %s251 = scalar_lea.sflag [#allocation5], %s250
        %s252 = sand.u32 %s143, 1
        %s253 = smul.addr %s252, 16
        %s254 = scalar_lea.vmem [#allocation4], %s253
        %p255 = pneg %p184
        %p256 = pneg %p181
        %s257 = sand.u32 %s23, 1
        %s258 = scalar_lea.sflag [#allocation5], %s257
        %s259 = sand.u32 %s171, 1
        %s260 = smul.addr %s259, 16
        %s261 = scalar_lea.vmem [#allocation6], %s260
        %p262 = scmp.lt.s32.totalorder %s27, 1
        %s263 = scalar_select %p262, %s27, 1
        %p264 = scmp.lt.s32.totalorder %s28, 0
        %s265 = scalar_select %p264, %s28, 0
        %s266 = smul.addr %s263, 2
        %s267 = sadd.s32 %s265, %s266
        %s268 = smul.addr %s267, 8
        %s269 = scalar_lea.vmem %s0, %s268
        %v270 = vld [vmem:[%s269] sm:$0xff]
        %v271 = vld [vmem:[%s269 + $0x8] sm:$0xff]
        %v272 = vld [vmem:[%s1] sm:$0xff]
        %v273 = vld [vmem:[%s1 + $0x8] sm:$0xff]
        %v274 = vld [vmem:[%s1 + $0x10] sm:$0xff]
        %v275 = vld [vmem:[%s1 + $0x18] sm:$0xff]
        %v276 = vld [vmem:[%s1 + $0x20] sm:$0xff]
        %v277 = vld [vmem:[%s1 + $0x28] sm:$0xff]
        %v278 = vld [vmem:[%s2] sm:$0xff]
        %v279 = vld [vmem:[%s2 + $0x8] sm:$0xff]
        %v280 = vld [vmem:[%s2 + $0x10] sm:$0xff]
        %v281 = vld [vmem:[%s2 + $0x18] sm:$0xff]
        %v282 = vld [vmem:[%s2 + $0x20] sm:$0xff]
        %v283 = vld [vmem:[%s2 + $0x28] sm:$0xff]
        %285 = vset.pattern.permute.xlu0 0
        %286 = vperm.xlu0 %285, %v278
        %v287 = vpop.permute.xlu0 %286
        %290 = vset.pattern.permute.xlu0 0
        %291 = vperm.xlu0 %290, %v279
        %v292 = vpop.permute.xlu0 %291
        %295 = vset.pattern.permute.xlu0 0
        %296 = vperm.xlu0 %295, %v280
        %v297 = vpop.permute.xlu0 %296
        %300 = vset.pattern.permute.xlu0 0
        %301 = vperm.xlu0 %300, %v281
        %v302 = vpop.permute.xlu0 %301
        %305 = vset.pattern.permute.xlu0 0
        %306 = vperm.xlu0 %305, %v282
        %v307 = vpop.permute.xlu0 %306
        %310 = vset.pattern.permute.xlu0 0
        %311 = vperm.xlu0 %310, %v283
        %v312 = vpop.permute.xlu0 %311
        %vm314 = vcmask 130048
        %v316 = vsel %vm314, %v272, 0
        %v319 = vsel %vm314, %v273, 0
        %v322 = vsel %vm314, %v274, 0
        %v325 = vsel %vm314, %v275, 0
        %v328 = vsel %vm314, %v276, 0
        %v331 = vsel %vm314, %v277, 0
        %333 = vmatprep.subr.mxu0 0.0
        %334 = vmatpush1.msra.mxu0 %v270
        %335 = vmatprep.subr.mxu0 0.0
        %336 = vmatpush1.msra.mxu0 %v271
        %337 = vmatprep.subr.mxu0 0.0
        %338 = vmatpush1.msra.mxu0 0.0
        %339 = vmatprep.subr.mxu0 0.0
        %340 = vmatpush1.msra.mxu0 0.0
        %341 = vmatprep.subr.mxu0 0.0
        %342 = vmatpush1.msra.mxu0 0.0
        %343 = vmatprep.subr.mxu0 0.0
        %344 = vmatpush1.msra.mxu0 0.0
        %345 = vmatprep.subr.mxu0 0.0
        %346 = vmatpush1.msra.mxu0 0.0
        %347 = vmatprep.subr.mxu0 0.0
        %348 = vmatpush1.msra.mxu0 0.0
        %349 = vmatprep.subr.mxu0 0.0
        %350 = vmatpush1.msra.mxu0 0.0
        %351 = vmatprep.subr.mxu0 0.0
        %352 = vmatpush1.msra.mxu0 0.0
        %353 = vmatprep.subr.mxu0 0.0
        %354 = vmatpush1.msra.mxu0 0.0
        %355 = vmatprep.subr.mxu0 0.0
        %356 = vmatpush1.msra.mxu0 0.0
        %357 = vmatprep.subr.mxu0 0.0
        %358 = vmatpush1.msra.mxu0 0.0
        %359 = vmatprep.subr.mxu0 0.0
        %360 = vmatpush1.msra.mxu0 0.0
        %361 = vmatprep.subr.mxu0 0.0
        %362 = vmatpush1.msra.mxu0 0.0
        %363 = vmatprep.subr.mxu0 0.0
        %364 = vmatpush1.msra.mxu0 0.0
        %365 = vmatprep.subr.mxu0 0.0
        %366 = vmatpush1.msra.mxu0 0.0
        %367 = vmatprep.subr.mxu0 0.0
        %368 = vmatpush1.msra.mxu0 0.0
        %369 = vmatprep.subr.mxu0 0.0
        %370 = vmatpush1.msra.mxu0 0.0
        %371 = vmatprep.subr.mxu0 0.0
        %372 = vmatpush1.msra.mxu0 0.0
        %373 = vmatprep.subr.mxu0 0.0
        %374 = vmatpush1.msra.mxu0 0.0
        %375 = vmatprep.subr.mxu0 0.0
        %376 = vmatpush1.msra.mxu0 0.0
        %377 = vmatprep.subr.mxu0 0.0
        %378 = vmatpush1.msra.mxu0 0.0
        %379 = vmatprep.subr.mxu0 0.0
        %380 = vmatpush1.msra.mxu0 0.0
        %381 = vmatprep.subr.mxu0 0.0
        %382 = vmatpush1.msra.mxu0 0.0
        %383 = vmatprep.subr.mxu0 0.0
        %384 = vmatpush1.msra.mxu0 0.0
        %385 = vmatprep.subr.mxu0 0.0
        %386 = vmatpush1.msra.mxu0 0.0
        %387 = vmatprep.subr.mxu0 0.0
        %388 = vmatpush1.msra.mxu0 0.0
        %389 = vmatprep.subr.mxu0 0.0
        %390 = vmatpush1.msra.mxu0 0.0
        %391 = vmatprep.subr.mxu0 0.0
        %392 = vmatpush1.msra.mxu0 0.0
        %393 = vmatprep.subr.mxu0 0.0
        %394 = vmatpush1.msra.mxu0 0.0
        %395 = vmatprep.subr.mxu0 0.0
        %396 = vmatpush1.msra.mxu0 0.0
        %397 = vmatprep.mubr.f32.mxu0 0.0
        %398 = vmatmul.mubr.f32.gmra.mrb[0].mxu0 %v316
        %v399 = vpop.f32.mrb[0].mxu0
        %v400 = vadd.f32 %v287, %v399
        %v401 = vpop.f32.mrb[0].mxu0
        %402 = vmatprep.mubr.f32.mxu0 0.0
        %403 = vmatmul.mubr.f32.gmra.mrb[0].mxu0 %v319
        %v404 = vpop.f32.mrb[0].mxu0
        %v405 = vadd.f32 %v292, %v404
        %v406 = vpop.f32.mrb[0].mxu0
        %407 = vmatprep.mubr.f32.mxu0 0.0
        %408 = vmatmul.mubr.f32.gmra.mrb[0].mxu0 %v322
        %v409 = vpop.f32.mrb[0].mxu0
        %v410 = vadd.f32 %v297, %v409
        %v411 = vpop.f32.mrb[0].mxu0
        %412 = vmatprep.mubr.f32.mxu0 0.0
        %413 = vmatmul.mubr.f32.gmra.mrb[0].mxu0 %v325
        %v414 = vpop.f32.mrb[0].mxu0
        %v415 = vadd.f32 %v302, %v414
        %v416 = vpop.f32.mrb[0].mxu0
        %417 = vmatprep.mubr.f32.mxu0 0.0
        %418 = vmatmul.mubr.f32.gmra.mrb[0].mxu0 %v328
        %v419 = vpop.f32.mrb[0].mxu0
        %v420 = vadd.f32 %v307, %v419
        %v421 = vpop.f32.mrb[0].mxu0
        %422 = vmatprep.mubr.f32.mxu0 0.0
        %423 = vmatmul.mubr.f32.gmra.mrb[0].mxu0 %v331
        %v424 = vpop.f32.mrb[0].mxu0
        %v425 = vadd.f32 %v312, %v424
        %v426 = vpop.f32.mrb[0].mxu0
        %427 = vdwg.mxu0
        %428 = vst [vmem:[%s247] sm:$0xff] %v400
        %429 = vst [vmem:[%s247 + $0x8] sm:$0xff] %v405
        %430 = vst [vmem:[%s254] sm:$0xff] %v410
        %431 = vst [vmem:[%s254 + $0x8] sm:$0xff] %v415
        %432 = vst [vmem:[%s261] sm:$0xff] %v420
        %433 = vst [vmem:[%s261 + $0x8] sm:$0xff] %v425
        %s434 = sand.u32 %s115, 1
        %s435 = scalar_lea.sflag [#allocation3], %s434
        %s436 = sand.u32 %s115, 1
        %s437 = smul.addr %s436, 16
        %s438 = scalar_lea.vmem [#allocation2], %s437
        %s439 = sand.u32 %s23, 1
        %s440 = scalar_lea.sflag [#allocation5], %s439
        %s441 = sand.u32 %s143, 1
        %s442 = smul.addr %s441, 16
        %s443 = scalar_lea.vmem [#allocation4], %s442
        %s444 = sand.u32 %s23, 1
        %s445 = scalar_lea.sflag [#allocation5], %s444
        %s446 = sand.u32 %s171, 1
        %s447 = smul.addr %s446, 16
        %s448 = scalar_lea.vmem [#allocation6], %s447
        // Predicated region
        $region33: #{tpu_custom_call.1} parent=31 // pred_check
          %p449 = pneg %p125
        $region34: #{tpu_custom_call.1} parent=31 // pred_check_branch
          %451 = sbr.rel (%p449) target = $region36
        $region35: #{tpu_custom_call.1} parent=31 // pred_region
          %s453 = ssub.s32 256, 256
          %454 = vsyncadd %s435, %s453
          %s455 = smul.addr %s27, 2
          %s456 = sadd.s32 %s28, %s455
          %s457 = smul.addr %s456, 128
          %s458 = scalar_lea.hbm %s3, %s457
          %s459 = sshll.u32 %s438, 4
          %s460 = int_to_ptr.vmem [resolvable:$true] %s459
          %465 = dma.vmem_to_hbm [thread:$0]  %s460, 256, %s458, %s435, 128, 128, 8
        $region36: #{tpu_custom_call.1} parent=31 // pred_fallthru
          _
        // Predicated region
        $region37: #{tpu_custom_call.1} parent=31 // pred_check
          %p466 = pneg %p153
        $region38: #{tpu_custom_call.1} parent=31 // pred_check_branch
          %468 = sbr.rel (%p466) target = $region40
        $region39: #{tpu_custom_call.1} parent=31 // pred_region
          %s470 = ssub.s32 256, 256
          %471 = vsyncadd %s440, %s470
          %s472 = smul.addr %s27, 2
          %s473 = sadd.s32 %s28, %s472
          %s474 = smul.addr %s473, 128
          %s475 = scalar_lea.hbm %s4, %s474
          %s476 = sshll.u32 %s443, 4
          %s477 = int_to_ptr.vmem [resolvable:$true] %s476
          %482 = dma.vmem_to_hbm [thread:$0]  %s477, 256, %s475, %s440, 128, 128, 8
        $region40: #{tpu_custom_call.1} parent=31 // pred_fallthru
          _
        // Predicated region
        $region41: #{tpu_custom_call.1} parent=31 // pred_check
          %p483 = pneg %p181
        $region42: #{tpu_custom_call.1} parent=31 // pred_check_branch
          %485 = sbr.rel (%p483) target = $region44
        $region43: #{tpu_custom_call.1} parent=31 // pred_region
          %s487 = ssub.s32 256, 256
          %488 = vsyncadd %s445, %s487
          %s489 = smul.addr %s27, 2
          %s490 = sadd.s32 %s28, %s489
          %s491 = smul.addr %s490, 128
          %s492 = scalar_lea.hbm %s5, %s491
          %s493 = sshll.u32 %s448, 4
          %s494 = int_to_ptr.vmem [resolvable:$true] %s493
          %499 = dma.vmem_to_hbm [thread:$0]  %s494, 256, %s492, %s445, 128, 128, 8
        $region44: #{tpu_custom_call.1} parent=31 // pred_fallthru
          _
      $region32: #{tpu_custom_call.1} parent=5 // pred_fallthru
        _
      %p500 = scmp.le.s32.totalorder 2, %s18
      // Predicated region
      $region45: #{tpu_custom_call.1} parent=5 // pred_check
        %p501 = pneg %p500
      $region46: #{tpu_custom_call.1} parent=5 // pred_check_branch
        %503 = sbr.rel (%p501) target = $region48
      $region47: #{tpu_custom_call.1} parent=5 // pred_region
        %s504 = ssub.s32 %s18, 2
        // Predicated region
        $region49: #{tpu_custom_call.1} parent=47 // pred_check
          %p505 = pneg %p131
        $region50: #{tpu_custom_call.1} parent=47 // pred_check_branch
          %507 = sbr.rel (%p505) target = $region52
        $region51: #{tpu_custom_call.1} parent=47 // pred_region
          %s508 = sand.u32 %s116, 1
          %s509 = scalar_lea.sflag [#allocation3], %s508
          %s510 = sand.u32 %s116, 1
          %s511 = smul.addr %s510, 16
          %s512 = scalar_lea.vmem [#allocation2], %s511
          %513 = dma.done %s509, 256
        $region52: #{tpu_custom_call.1} parent=47 // pred_fallthru
          _
        // Predicated region
        $region53: #{tpu_custom_call.1} parent=47 // pred_check
          %p514 = pneg %p159
        $region54: #{tpu_custom_call.1} parent=47 // pred_check_branch
          %516 = sbr.rel (%p514) target = $region56
        $region55: #{tpu_custom_call.1} parent=47 // pred_region
          %s517 = sand.u32 %s24, 1
          %s518 = scalar_lea.sflag [#allocation5], %s517
          %s519 = sand.u32 %s144, 1
          %s520 = smul.addr %s519, 16
          %s521 = scalar_lea.vmem [#allocation4], %s520
          %522 = dma.done %s518, 256
        $region56: #{tpu_custom_call.1} parent=47 // pred_fallthru
          _
        // Predicated region
        $region57: #{tpu_custom_call.1} parent=47 // pred_check
          %p523 = pneg %p187
        $region58: #{tpu_custom_call.1} parent=47 // pred_check_branch
          %525 = sbr.rel (%p523) target = $region60
        $region59: #{tpu_custom_call.1} parent=47 // pred_region
          %s526 = sand.u32 %s24, 1
          %s527 = scalar_lea.sflag [#allocation5], %s526
          %s528 = sand.u32 %s172, 1
          %s529 = smul.addr %s528, 16
          %s530 = scalar_lea.vmem [#allocation6], %s529
          %531 = dma.done %s527, 256
        $region60: #{tpu_custom_call.1} parent=47 // pred_fallthru
          _
      $region48: #{tpu_custom_call.1} parent=5 // pred_fallthru
        _
    $region6: #{tpu_custom_call.1} parent=1 // loop_footer
      %s22 = sadd.s32 1, %s18
    $region7: #{tpu_custom_call.1} parent=1 // loop_footer_branch
      %17 = sbr.rel target = $region3
    $region8: #{tpu_custom_call.1} parent=1 // loop_exit
      _
    %532 = vsyncpa [#allocation3], 1
    %s533 = scalar_lea.sflag [#allocation3], 1
    %534 = vsyncpa %s533, 1
    %535 = vsyncpa [#allocation5], 1
    %s536 = scalar_lea.sflag [#allocation5], 1
    %537 = vsyncpa %s536, 1

</llo_original>
